<compile_context>
chip_gen: v7x
topology: tpu7x:2x2x1
jax: 0.10.0
libtpu: 0.0.40
codegen_flags: <defaults>
</compile_context>

<pallas_src>
import functools

import jax
import jax.numpy as jnp
from jax.experimental import pallas as pl
from jax.experimental.pallas import tpu as pltpu


def _spatial_block_kernel(x_ref, w_ref, d_ref, out_ref, *, add_identity,
                          compute_dtype):
    """One row-tile per grid step.

    x_ref   : (tR, V*Cin)   channels-last rows (row = one (n, t) pair), f32
    w_ref   : (V*Cin, V*Cout)  folded weight (A*edge, conv W, BN scale), bf16
    d_ref   : (1, V*Cout)   folded additive term (conv bias through A, BN shift)
    out_ref : (tR, V*Cout)
    """
    xb = x_ref[...]
    acc = jnp.dot(xb.astype(compute_dtype), w_ref[...],
                  preferred_element_type=jnp.float32)          # MXU, f32 accumulate
    acc = acc + d_ref[...]
    if add_identity:
        # Identity residual (in_channels == out_channels): exact f32 add of the
        # already-resident input block.
        acc = acc + xb.astype(jnp.float32)
    out_ref[...] = jnp.maximum(acc, 0.0).astype(out_ref.dtype)


def _pick_row_tile(n_rows, bytes_per_row, vmem_budget_bytes=8 * 1024 * 1024):
    """Row tile so double-buffered (input + output) blocks fit a VMEM budget."""
    t = vmem_budget_bytes // max(1, 2 * bytes_per_row)
    t = int(max(8, min(t, 1024)))
    t -= t % 8
    if t >= n_rows:
        return n_rows          # full extent is always a legal block dim
    return t


def spatial_basic_block(x_nchw, A, edge, w_gcn, b_gcn, bn_gamma, bn_beta,
                        bn_mean, bn_var, *, max_graph_distance, residual=False,
                        eps=1e-5, residual_conv_params=None,
                        compute_dtype=jnp.bfloat16, out_dtype=None):
    """Pallas implementation of Spatial_Basic_Block.forward(x) (inference BN)."""
    N, Cin, T, V = x_nchw.shape
    K = max_graph_distance + 1
    KCout = w_gcn.shape[0]
    Cout = KCout // K
    out_dtype = x_nchw.dtype if out_dtype is None else out_dtype

    # ---- fold everything that is weight-only into one matmul + one bias -------
    A_eff = (A[:K] * edge[:K]).astype(jnp.float32)                 # (K, V, V)
    Wg = w_gcn.reshape(K, Cout, Cin).astype(jnp.float32)           # (K, Cout, Cin)
    bg = b_gcn.reshape(K, Cout).astype(jnp.float32)                # (K, Cout)
    scale = bn_gamma / jnp.sqrt(bn_var + eps)
    shift = bn_beta - bn_mean * scale

    # B[(v,ci),(w,c)] = sum_k A_eff[k,v,w] * Wg[k,c,ci] * scale[c]
    B = jnp.einsum('kvw,kcq->vqwc', A_eff, Wg) * scale[None, None, None, :]
    # D[w,c] = (sum_{k,v} A_eff[k,v,w] * bias[k,c]) * scale[c] + shift[c]
    D = jnp.einsum('kvw,kc->wc', A_eff, bg) * scale[None, :] + shift[None, :]

    add_identity = bool(residual and Cin == Cout)
    if residual and Cin != Cout:
        # Conv2d(1x1) + BatchNorm2d downsample residual, folded into B / D.
        # (Runs through the bf16 matmul path like the main branch.)
        if residual_conv_params is None:
            raise ValueError("residual with Cin != Cout needs residual_conv_params")
        wr, br, gr, ber, mr, vr = residual_conv_params
        sr = gr / jnp.sqrt(vr + eps)
        hr = ber - mr * sr
        Wr = wr.reshape(Cout, Cin).astype(jnp.float32)
        eye_v = jnp.eye(V, dtype=jnp.float32)
        B = B + jnp.einsum('vw,cq->vqwc', eye_v, Wr * sr[:, None])
        D = D + (br.astype(jnp.float32) * sr + hr)[None, :]

    B2 = B.reshape(V * Cin, V * Cout).astype(compute_dtype)        # (V*Cin, V*Cout)
    D2 = D.reshape(1, V * Cout).astype(jnp.float32)                # (1, V*Cout)

    # ---- channels-last rows: (n, t) are batch dims for this op ----------------
    x2 = jnp.transpose(x_nchw, (0, 2, 3, 1)).reshape(N * T, V * Cin)
    R = N * T

    bytes_per_row = (V * Cin * x2.dtype.itemsize
                     + V * Cout * jnp.dtype(out_dtype).itemsize)
    tR = _pick_row_tile(R, bytes_per_row)

    kernel = functools.partial(_spatial_block_kernel,
                               add_identity=add_identity,
                               compute_dtype=compute_dtype)

    out2 = pl.pallas_call(
        kernel,
        out_shape=jax.ShapeDtypeStruct((R, V * Cout), out_dtype),
        grid_spec=pltpu.PrefetchScalarGridSpec(
            num_scalar_prefetch=0,
            grid=(pl.cdiv(R, tR),),
            in_specs=[
                pl.BlockSpec((tR, V * Cin), lambda i: (i, 0)),
                pl.BlockSpec((V * Cin, V * Cout), lambda i: (0, 0)),
                pl.BlockSpec((1, V * Cout), lambda i: (0, 0)),
            ],
            out_specs=pl.BlockSpec((tR, V * Cout), lambda i: (i, 0)),
        ),
        compiler_params=pltpu.CompilerParams(
            dimension_semantics=("parallel",),
            vmem_limit_bytes=32 * 1024 * 1024),
    )(x2, B2, D2)

    # rows -> (N, T, V, Cout) -> NCHW (keep NTVC in chained blocks to avoid this).
    return jnp.transpose(out2.reshape(N, T, V, Cout), (0, 3, 1, 2))


def _reference(x, A, edge, w_gcn, b_gcn, gamma, beta, mean, var, *,
               max_graph_distance, residual, eps=1e-5, residual_conv_params=None):
    """Pure-JAX NCHW reference mirroring the PyTorch module (inference BN)."""
    N, Cin, T, V = x.shape
    K = max_graph_distance + 1
    KCout = w_gcn.shape[0]
    Cout = KCout // K
    A_eff = A[:K] * edge[:K]
    W2 = w_gcn.reshape(KCout, Cin)
    y = jnp.einsum('oc,nctv->notv', W2, x) + b_gcn[None, :, None, None]
    y = y.reshape(N, K, Cout, T, V)
    y = jnp.einsum('nkctv,kvw->nctw', y, A_eff)
    scale = gamma / jnp.sqrt(var + eps)
    shift = beta - mean * scale
    y = y * scale[None, :, None, None] + shift[None, :, None, None]
    if not residual:
        res = 0.0
    elif Cin == Cout:
        res = x
    else:
        wr, br, gr, ber, mr, vr = residual_conv_params
        r = jnp.einsum('oc,nctv->notv', wr.reshape(Cout, Cin), x)
        r = r + br[None, :, None, None]
        sr = gr / jnp.sqrt(vr + eps)
        hr = ber - mr * sr
        res = r * sr[None, :, None, None] + hr[None, :, None, None]
    return jnp.maximum(y + res, 0.0)


if __name__ == "__main__":
    # Small, module-consistent shapes: N=2, C=32 channels, T=16 frames, V=8 joints.
    N, Cin, T, V = 2, 32, 16, 8
    max_graph_distance = 1
    K = max_graph_distance + 1
    Cout = Cin                 # identity residual path (in_channels == out_channels)
    residual = True

    key = jax.random.PRNGKey(0)
    ks = jax.random.split(key, 9)

    x = jax.random.normal(ks[0], (N, Cin, T, V), jnp.float32)

    # Normalized-adjacency-like A, edge-importance weights near 1.
    A_raw = jax.random.uniform(ks[1], (K, V, V), jnp.float32)
    A = A_raw / A_raw.sum(axis=1, keepdims=True)
    edge = 1.0 + 0.05 * jax.random.normal(ks[2], (K, V, V), jnp.float32)

    # Conv2d(Cin, Cout * K, 1) parameters.
    w_gcn = 0.1 * jax.random.normal(ks[3], (K * Cout, Cin, 1, 1), jnp.float32)
    b_gcn = 0.1 * jax.random.normal(ks[4], (K * Cout,), jnp.float32)

    # BatchNorm2d(Cout) running stats + affine (inference mode).
    gamma = 1.0 + 0.1 * jax.random.normal(ks[5], (Cout,), jnp.float32)
    beta = 0.1 * jax.random.normal(ks[6], (Cout,), jnp.float32)
    mean = 0.1 * jax.random.normal(ks[7], (Cout,), jnp.float32)
    var = jnp.abs(jax.random.normal(ks[8], (Cout,), jnp.float32)) + 0.5

    out = spatial_basic_block(
        x, A, edge, w_gcn, b_gcn, gamma, beta, mean, var,
        max_graph_distance=max_graph_distance, residual=residual)
    out = jax.block_until_ready(out)

    ref = _reference(
        x, A, edge, w_gcn, b_gcn, gamma, beta, mean, var,
        max_graph_distance=max_graph_distance, residual=residual)
    ref = jax.block_until_ready(ref)

    assert out.shape == (N, Cout, T, V), out.shape
    # bf16 matmul operands (f32 accumulate) vs f32 reference -> loose-ish tolerance.
    assert jnp.allclose(out, ref, atol=1e-2, rtol=1e-2), \
        float(jnp.max(jnp.abs(out - ref)))

    print("KERNEL_OK")
</pallas_src>

<mosaic_0001>
module attributes {stable_mosaic.version = 11 : i64} {
  func.func @_spatial_block_kernel(%arg0: i32, %arg1: memref<32x256xf32, #tpu.memory_space<vmem>>, %arg2: memref<256x256xbf16, #tpu.memory_space<vmem>>, %arg3: memref<1x256xf32, #tpu.memory_space<vmem>>, %arg4: memref<32x256xf32, #tpu.memory_space<vmem>>) attributes {dimension_semantics = [#tpu.dimension_semantics<parallel>], iteration_bounds = array<i64: 1>, scalar_prefetch = 0 : i64, scratch_operands = 0 : i64, tpu.core_type = #tpu.core_type<tc>, window_params = [{transform_indices = @transform_0, window_bounds = array<i64: 32, 256>}, {pipeline_mode = #tpu.pipeline_mode<synchronous>, transform_indices = @transform_1, window_bounds = array<i64: 256, 256>}, {pipeline_mode = #tpu.pipeline_mode<synchronous>, transform_indices = @transform_2, window_bounds = array<i64: 1, 256>}, {transform_indices = @transform_3, window_bounds = array<i64: 32, 256>}]} {
    %c0 = arith.constant 0 : index
    %c0_0 = arith.constant 0 : index
    %0 = vector.load %arg1[%c0, %c0_0] : memref<32x256xf32, #tpu.memory_space<vmem>>, vector<32x256xf32>
    %1 = arith.truncf %0 : vector<32x256xf32> to vector<32x256xbf16>
    %c0_1 = arith.constant 0 : index
    %c0_2 = arith.constant 0 : index
    %2 = vector.load %arg2[%c0_1, %c0_2] : memref<256x256xbf16, #tpu.memory_space<vmem>>, vector<256x256xbf16>
    %cst = arith.constant dense<0.000000e+00> : vector<32x256xf32>
    %3 = tpu.matmul %1, %2, %cst {dimension_numbers = #tpu.dot_dimension_numbers<[1], [0], [0], [1], [0, 0, 1, 1], [], []>} : vector<32x256xbf16>, vector<256x256xbf16>, vector<32x256xf32> -> vector<32x256xf32>
    %c0_3 = arith.constant 0 : index
    %c0_4 = arith.constant 0 : index
    %4 = vector.load %arg3[%c0_3, %c0_4] : memref<1x256xf32, #tpu.memory_space<vmem>>, vector<1x256xf32>
    %5 = vector.broadcast %4 : vector<1x256xf32> to vector<32x256xf32>
    %6 = arith.addf %3, %5 : vector<32x256xf32>
    %7 = arith.addf %6, %0 : vector<32x256xf32>
    %cst_5 = arith.constant 0.000000e+00 : f32
    %8 = vector.broadcast %cst_5 : f32 to vector<32x256xf32>
    %9 = arith.maximumf %7, %8 : vector<32x256xf32>
    %c0_6 = arith.constant 0 : index
    %c0_7 = arith.constant 0 : index
    %10 = vector.load %arg4[%c0_6, %c0_7] : memref<32x256xf32, #tpu.memory_space<vmem>>, vector<32x256xf32>
    tpu.vector_store %arg4[%c0_6, %c0_7], %9 {strides = array<i32>} : memref<32x256xf32, #tpu.memory_space<vmem>>, vector<32x256xf32>,
    return
  }
  func.func @transform_0(%arg0: i32) -> (i32, i32) {
    %c0_i32 = arith.constant 0 : i32
    %c0_i32_0 = arith.constant 0 : i32
    return %arg0, %c0_i32 : i32, i32
  }
  func.func @transform_1(%arg0: i32) -> (i32, i32) {
    %c0_i32 = arith.constant 0 : i32
    %c0_i32_0 = arith.constant 0 : i32
    %c0_i32_1 = arith.constant 0 : i32
    return %c0_i32, %c0_i32_0 : i32, i32
  }
  func.func @transform_2(%arg0: i32) -> (i32, i32) {
    %c0_i32 = arith.constant 0 : i32
    %c0_i32_0 = arith.constant 0 : i32
    %c0_i32_1 = arith.constant 0 : i32
    return %c0_i32, %c0_i32_0 : i32, i32
  }
  func.func @transform_3(%arg0: i32) -> (i32, i32) {
    %c0_i32 = arith.constant 0 : i32
    %c0_i32_0 = arith.constant 0 : i32
    return %arg0, %c0_i32 : i32, i32
  }
}

</mosaic_0001>

<llo_original>
// kernel: tpu_custom_call.1
$region0: #{tpu_custom_call.1}
  #allocation0 [shape = 'u32[]', space=smem, size = 0x4, offset = 0x4, fixed_abs, tag = 'smem constant byte address 0x4 - core index']
  #allocation1 [shape = 'u32[144,128]{1,0:T(1,128)}', space=vmem, size = 0x12000, scoped, tag = 'internal scratch']
  %s0 = inlined_call_operand.hbm [shape: f32[32,256], index: 0, kind: input, shape index: {}]
  %s1 = inlined_call_operand.hbm [shape: bf16[256,256], index: 1, kind: input, shape index: {}]
  %s2 = inlined_call_operand.vmem [shape: f32[1,256], index: 2, kind: input, shape index: {}]
  %s3 = inlined_call_operand.hbm [shape: f32[32,256], index: 3, kind: output, shape index: {}]
  %s4 = sld [smem:[#allocation0]]
  $region30: #{tpu_custom_call.1} parent=0
    _
  %s6 = ssub.s32 1, %s4
  %s7 = scalar_select 0, %s6, %s4
  $region1: #{tpu_custom_call.1} parent=0
    #allocation2 [shape = 'u8[32768]{0}', space=vmem, size = 0x8000, scoped, tag = 'input window, operand 0, single buffered']
    #allocation3 [shape = 's32[1]{0}', space=sflag, size = 0x4, scoped, tag = 'scoped memory for tpu_custom_call.1']
    #allocation4 [shape = 's32[1]{0}', space=sflag, size = 0x4, scoped, tag = 'scoped memory for tpu_custom_call.1']
    #allocation5 [shape = 'u8[131072]{0}', space=vmem, size = 0x20000, scoped, tag = 'input window, operand 1, single buffered']
    #allocation6 [shape = 's32[1]{0}', space=sflag, size = 0x4, scoped, tag = 'scoped memory for tpu_custom_call.1']
    #allocation7 [shape = 'u8[32768]{0}', space=vmem, size = 0x8000, scoped, tag = 'output window, operand 0, single buffered']
    %8 = vsyncpa [#allocation3], 0
    %9 = vsyncpa [#allocation6], 0
    %10 = vsyncpa [#allocation4], 0
    // Predicated region
    $region2: #{tpu_custom_call.1} parent=1 // pred_check
      _
    $region3: #{tpu_custom_call.1} parent=1 // pred_check_branch
      %12 = sbr.rel (0) target = $region5
    $region4: #{tpu_custom_call.1} parent=1 // pred_region
      %s14 = ssub.s32 1024, 1024
      %15 = vsyncadd [#allocation3], %s14
      %s16 = sshll.u32 [#allocation2], 4
      %s17 = int_to_ptr.vmem [resolvable:$true] %s16
      %22 = dma.hbm_to_vmem [thread:$0]  %s0, 1024, %s17, [#allocation3], 256, 256, 16
    $region5: #{tpu_custom_call.1} parent=1 // pred_fallthru
      _
    // Predicated region
    $region6: #{tpu_custom_call.1} parent=1 // pred_check
      _
    $region7: #{tpu_custom_call.1} parent=1 // pred_check_branch
      %24 = sbr.rel (0) target = $region9
    $region8: #{tpu_custom_call.1} parent=1 // pred_region
      %s26 = ssub.s32 4096, 4096
      %27 = vsyncadd [#allocation6], %s26
      %s28 = sshll.u32 [#allocation5], 4
      %s29 = int_to_ptr.vmem [resolvable:$true] %s28
      %34 = dma.hbm_to_vmem [thread:$0]  %s1, 4096, %s29, [#allocation6], 128, 128, 8
    $region9: #{tpu_custom_call.1} parent=1 // pred_fallthru
      _
    // Predicated region
    $region10: #{tpu_custom_call.1} parent=1 // pred_check
      _
    $region11: #{tpu_custom_call.1} parent=1 // pred_check_branch
      %36 = sbr.rel (0) target = $region13
    $region12: #{tpu_custom_call.1} parent=1 // pred_region
      _
    $region13: #{tpu_custom_call.1} parent=1 // pred_fallthru
      _
    // Predicated region
    $region14: #{tpu_custom_call.1} parent=1 // pred_check
      _
    $region15: #{tpu_custom_call.1} parent=1 // pred_check_branch
      %38 = sbr.rel (0) target = $region17
    $region16: #{tpu_custom_call.1} parent=1 // pred_region
      %39 = dma.done [#allocation3], 1024
    $region17: #{tpu_custom_call.1} parent=1 // pred_fallthru
      _
    // Predicated region
    $region18: #{tpu_custom_call.1} parent=1 // pred_check
      _
    $region19: #{tpu_custom_call.1} parent=1 // pred_check_branch
      %41 = sbr.rel (0) target = $region21
    $region20: #{tpu_custom_call.1} parent=1 // pred_region
      %42 = dma.done [#allocation6], 4096
    $region21: #{tpu_custom_call.1} parent=1 // pred_fallthru
      _
    %v43 = vld [vmem:[#allocation2] sm:$0xff]
    %v44 = vld [vmem:[#allocation2 + $0x8] sm:$0xff]
    %v45 = vld [vmem:[#allocation2 + $0x10] sm:$0xff]
    %v46 = vld [vmem:[#allocation2 + $0x18] sm:$0xff]
    %v47 = vld [vmem:[#allocation2 + $0x20] sm:$0xff]
    %v48 = vld [vmem:[#allocation2 + $0x28] sm:$0xff]
    %v49 = vld [vmem:[#allocation2 + $0x30] sm:$0xff]
    %v50 = vld [vmem:[#allocation2 + $0x38] sm:$0xff]
    %v51 = vpack.c.bf16 %v45, %v43
    %v52 = vpack.c.bf16 %v46, %v44
    %v53 = vpack.c.bf16 %v49, %v47
    %v54 = vpack.c.bf16 %v50, %v48
    %v55 = vld [vmem:[#allocation5] sm:$0xff]
    %v56 = vld [vmem:[#allocation5 + $0x8] sm:$0xff]
    %v57 = vld [vmem:[#allocation5 + $0x10] sm:$0xff]
    %v58 = vld [vmem:[#allocation5 + $0x18] sm:$0xff]
    %v59 = vld [vmem:[#allocation5 + $0x20] sm:$0xff]
    %v60 = vld [vmem:[#allocation5 + $0x28] sm:$0xff]
    %v61 = vld [vmem:[#allocation5 + $0x30] sm:$0xff]
    %v62 = vld [vmem:[#allocation5 + $0x38] sm:$0xff]
    %v63 = vld [vmem:[#allocation5 + $0x40] sm:$0xff]
    %v64 = vld [vmem:[#allocation5 + $0x48] sm:$0xff]
    %v65 = vld [vmem:[#allocation5 + $0x50] sm:$0xff]
    %v66 = vld [vmem:[#allocation5 + $0x58] sm:$0xff]
    %v67 = vld [vmem:[#allocation5 + $0x60] sm:$0xff]
    %v68 = vld [vmem:[#allocation5 + $0x68] sm:$0xff]
    %v69 = vld [vmem:[#allocation5 + $0x70] sm:$0xff]
    %v70 = vld [vmem:[#allocation5 + $0x78] sm:$0xff]
    %v71 = vld [vmem:[#allocation5 + $0x80] sm:$0xff]
    %v72 = vld [vmem:[#allocation5 + $0x88] sm:$0xff]
    %v73 = vld [vmem:[#allocation5 + $0x90] sm:$0xff]
    %v74 = vld [vmem:[#allocation5 + $0x98] sm:$0xff]
    %v75 = vld [vmem:[#allocation5 + $0xa0] sm:$0xff]
    %v76 = vld [vmem:[#allocation5 + $0xa8] sm:$0xff]
    %v77 = vld [vmem:[#allocation5 + $0xb0] sm:$0xff]
    %v78 = vld [vmem:[#allocation5 + $0xb8] sm:$0xff]
    %v79 = vld [vmem:[#allocation5 + $0xc0] sm:$0xff]
    %v80 = vld [vmem:[#allocation5 + $0xc8] sm:$0xff]
    %v81 = vld [vmem:[#allocation5 + $0xd0] sm:$0xff]
    %v82 = vld [vmem:[#allocation5 + $0xd8] sm:$0xff]
    %v83 = vld [vmem:[#allocation5 + $0xe0] sm:$0xff]
    %v84 = vld [vmem:[#allocation5 + $0xe8] sm:$0xff]
    %v85 = vld [vmem:[#allocation5 + $0xf0] sm:$0xff]
    %v86 = vld [vmem:[#allocation5 + $0xf8] sm:$0xff]
    %v87 = vld [vmem:[%s2] sm:$0x3]
    %v89 = vlaneseq
    %v90 = vshrl.u32 %v89, 7
    %v91 = vsub.s32 0, %v90
    %v92 = vrot.slane %v87, %v91
    %v93 = vlaneseq
    %v94 = vshrl.u32 %v93, 7
    %v95 = vsub.s32 1, %v94
    %v96 = vrot.slane %v87, %v95
    %v131 = vunpack.c.l.b16 %v55
    %v132 = vunpack.c.h.b16 %v55
    %v133 = vunpack.c.l.b16 %v56
    %v134 = vunpack.c.h.b16 %v56
    %v135 = vunpack.c.l.b16 %v57
    %v136 = vunpack.c.h.b16 %v57
    %v137 = vunpack.c.l.b16 %v58
    %v138 = vunpack.c.h.b16 %v58
    %v139 = vunpack.c.l.b16 %v59
    %v140 = vunpack.c.h.b16 %v59
    %v141 = vunpack.c.l.b16 %v60
    %v142 = vunpack.c.h.b16 %v60
    %v143 = vunpack.c.l.b16 %v61
    %v144 = vunpack.c.h.b16 %v61
    %v145 = vunpack.c.l.b16 %v62
    %v146 = vunpack.c.h.b16 %v62
    %v147 = vunpack.c.l.b16 %v63
    %v148 = vunpack.c.h.b16 %v63
    %v149 = vunpack.c.l.b16 %v64
    %v150 = vunpack.c.h.b16 %v64
    %v151 = vunpack.c.l.b16 %v65
    %v152 = vunpack.c.h.b16 %v65
    %v153 = vunpack.c.l.b16 %v66
    %v154 = vunpack.c.h.b16 %v66
    %v155 = vunpack.c.l.b16 %v67
    %v156 = vunpack.c.h.b16 %v67
    %v157 = vunpack.c.l.b16 %v68
    %v158 = vunpack.c.h.b16 %v68
    %v159 = vunpack.c.l.b16 %v69
    %v160 = vunpack.c.h.b16 %v69
    %v161 = vunpack.c.l.b16 %v70
    %v162 = vunpack.c.h.b16 %v70
    %v163 = vunpack.c.l.b16 %v71
    %v164 = vunpack.c.h.b16 %v71
    %v165 = vunpack.c.l.b16 %v72
    %v166 = vunpack.c.h.b16 %v72
    %v167 = vunpack.c.l.b16 %v73
    %v168 = vunpack.c.h.b16 %v73
    %v169 = vunpack.c.l.b16 %v74
    %v170 = vunpack.c.h.b16 %v74
    %v171 = vunpack.c.l.b16 %v75
    %v172 = vunpack.c.h.b16 %v75
    %v173 = vunpack.c.l.b16 %v76
    %v174 = vunpack.c.h.b16 %v76
    %v175 = vunpack.c.l.b16 %v77
    %v176 = vunpack.c.h.b16 %v77
    %v177 = vunpack.c.l.b16 %v78
    %v178 = vunpack.c.h.b16 %v78
    %v179 = vunpack.c.l.b16 %v79
    %v180 = vunpack.c.h.b16 %v79
    %v181 = vunpack.c.l.b16 %v80
    %v182 = vunpack.c.h.b16 %v80
    %v183 = vunpack.c.l.b16 %v81
    %v184 = vunpack.c.h.b16 %v81
    %v185 = vunpack.c.l.b16 %v82
    %v186 = vunpack.c.h.b16 %v82
    %v187 = vunpack.c.l.b16 %v83
    %v188 = vunpack.c.h.b16 %v83
    %v189 = vunpack.c.l.b16 %v84
    %v190 = vunpack.c.h.b16 %v84
    %v191 = vunpack.c.l.b16 %v85
    %v192 = vunpack.c.h.b16 %v85
    %v193 = vunpack.c.l.b16 %v86
    %v194 = vunpack.c.h.b16 %v86
    %v195 = vpack.c.b16 %v133, %v131
    %v196 = vpack.c.b16 %v134, %v132
    %v197 = vpack.c.b16 %v137, %v135
    %v198 = vpack.c.b16 %v138, %v136
    %v199 = vpack.c.b16 %v141, %v139
    %v200 = vpack.c.b16 %v142, %v140
    %v201 = vpack.c.b16 %v145, %v143
    %v202 = vpack.c.b16 %v146, %v144
    %v203 = vpack.c.b16 %v149, %v147
    %v204 = vpack.c.b16 %v150, %v148
    %v205 = vpack.c.b16 %v153, %v151
    %v206 = vpack.c.b16 %v154, %v152
    %v207 = vpack.c.b16 %v157, %v155
    %v208 = vpack.c.b16 %v158, %v156
    %v209 = vpack.c.b16 %v161, %v159
    %v210 = vpack.c.b16 %v162, %v160
    %v211 = vpack.c.b16 %v165, %v163
    %v212 = vpack.c.b16 %v166, %v164
    %v213 = vpack.c.b16 %v169, %v167
    %v214 = vpack.c.b16 %v170, %v168
    %v215 = vpack.c.b16 %v173, %v171
    %v216 = vpack.c.b16 %v174, %v172
    %v217 = vpack.c.b16 %v177, %v175
    %v218 = vpack.c.b16 %v178, %v176
    %v219 = vpack.c.b16 %v181, %v179
    %v220 = vpack.c.b16 %v182, %v180
    %v221 = vpack.c.b16 %v185, %v183
    %v222 = vpack.c.b16 %v186, %v184
    %v223 = vpack.c.b16 %v189, %v187
    %v224 = vpack.c.b16 %v190, %v188
    %v225 = vpack.c.b16 %v193, %v191
    %v226 = vpack.c.b16 %v194, %v192
    %259 = vmatprep.subr.bf16.mxu0 %v196
    %260 = vmatpush1.bf16.msra.mxu0 %v195
    %261 = vmatprep.subr.bf16.mxu0 %v198
    %262 = vmatpush1.bf16.msra.mxu0 %v197
    %263 = vmatprep.subr.bf16.mxu0 %v200
    %264 = vmatpush1.bf16.msra.mxu0 %v199
    %265 = vmatprep.subr.bf16.mxu0 %v202
    %266 = vmatpush1.bf16.msra.mxu0 %v201
    %267 = vmatprep.subr.bf16.mxu0 %v204
    %268 = vmatpush1.bf16.msra.mxu0 %v203
    %269 = vmatprep.subr.bf16.mxu0 %v206
    %270 = vmatpush1.bf16.msra.mxu0 %v205
    %271 = vmatprep.subr.bf16.mxu0 %v208
    %272 = vmatpush1.bf16.msra.mxu0 %v207
    %273 = vmatprep.subr.bf16.mxu0 %v210
    %274 = vmatpush1.bf16.msra.mxu0 %v209
    %275 = vmatprep.subr.bf16.mxu0 %v212
    %276 = vmatpush1.bf16.msra.mxu0 %v211
    %277 = vmatprep.subr.bf16.mxu0 %v214
    %278 = vmatpush1.bf16.msra.mxu0 %v213
    %279 = vmatprep.subr.bf16.mxu0 %v216
    %280 = vmatpush1.bf16.msra.mxu0 %v215
    %281 = vmatprep.subr.bf16.mxu0 %v218
    %282 = vmatpush1.bf16.msra.mxu0 %v217
    %283 = vmatprep.subr.bf16.mxu0 %v220
    %284 = vmatpush1.bf16.msra.mxu0 %v219
    %285 = vmatprep.subr.bf16.mxu0 %v222
    %286 = vmatpush1.bf16.msra.mxu0 %v221
    %287 = vmatprep.subr.bf16.mxu0 %v224
    %288 = vmatpush1.bf16.msra.mxu0 %v223
    %289 = vmatprep.subr.bf16.mxu0 %v226
    %290 = vmatpush1.bf16.msra.mxu0 %v225
    %291 = vmatprep.mubr.bf16.mxu0 %v52
    %292 = vmatmul.mubr.bf16.gmra.mrb[0].mxu0 %v51
    %v293 = vpop.f32.mrb[0].mxu0
    %v294 = vadd.f32 %v92, %v293
    %v295 = vpop.f32.mrb[0].mxu0
    %v296 = vadd.f32 %v96, %v295
    %v297 = vpop.f32.mrb[0].mxu0
    %v298 = vadd.f32 %v92, %v297
    %v299 = vpop.f32.mrb[0].mxu0
    %v300 = vadd.f32 %v96, %v299
    %301 = vmatprep.mubr.bf16.mxu0 %v54
    %302 = vmatmul.mubr.bf16.gmra.mrb[0].mxu0 %v53
    %v303 = vpop.f32.mrb[0].mxu0
    %v304 = vadd.f32 %v92, %v303
    %v305 = vpop.f32.mrb[0].mxu0
    %v306 = vadd.f32 %v96, %v305
    %v307 = vpop.f32.mrb[0].mxu0
    %v308 = vadd.f32 %v92, %v307
    %v309 = vpop.f32.mrb[0].mxu0
    %v310 = vadd.f32 %v96, %v309
    %311 = vdwg.mxu0
    %v312 = vadd.f32 %v294, %v43
    %v313 = vadd.f32 %v296, %v44
    %v314 = vadd.f32 %v298, %v45
    %v315 = vadd.f32 %v300, %v46
    %v316 = vadd.f32 %v304, %v47
    %v317 = vadd.f32 %v306, %v48
    %v318 = vadd.f32 %v308, %v49
    %v319 = vadd.f32 %v310, %v50
    %v320 = vmax.f32 %v312, 0.0
    %v321 = vmax.f32 %v313, 0.0
    %v322 = vmax.f32 %v314, 0.0
    %v323 = vmax.f32 %v315, 0.0
    %v324 = vmax.f32 %v316, 0.0
    %v325 = vmax.f32 %v317, 0.0
    %v326 = vmax.f32 %v318, 0.0
    %v327 = vmax.f32 %v319, 0.0
    %328 = vst [vmem:[#allocation7] sm:$0xff] %v320
    %329 = vst [vmem:[#allocation7 + $0x8] sm:$0xff] %v321
    %330 = vst [vmem:[#allocation7 + $0x10] sm:$0xff] %v322
    %331 = vst [vmem:[#allocation7 + $0x18] sm:$0xff] %v323
    %332 = vst [vmem:[#allocation7 + $0x20] sm:$0xff] %v324
    %333 = vst [vmem:[#allocation7 + $0x28] sm:$0xff] %v325
    %334 = vst [vmem:[#allocation7 + $0x30] sm:$0xff] %v326
    %335 = vst [vmem:[#allocation7 + $0x38] sm:$0xff] %v327
    // Predicated region
    $region22: #{tpu_custom_call.1} parent=1 // pred_check
      _
    $region23: #{tpu_custom_call.1} parent=1 // pred_check_branch
      %337 = sbr.rel (0) target = $region25
    $region24: #{tpu_custom_call.1} parent=1 // pred_region
      %s339 = ssub.s32 1024, 1024
      %340 = vsyncadd [#allocation4], %s339
      %s341 = sshll.u32 [#allocation7], 4
      %s342 = int_to_ptr.vmem [resolvable:$true] %s341
      %347 = dma.vmem_to_hbm [thread:$0]  %s342, 1024, %s3, [#allocation4], 256, 256, 16
    $region25: #{tpu_custom_call.1} parent=1 // pred_fallthru
      _
    // Predicated region
    $region26: #{tpu_custom_call.1} parent=1 // pred_check
      _
    $region27: #{tpu_custom_call.1} parent=1 // pred_check_branch
      %349 = sbr.rel (0) target = $region29
    $region28: #{tpu_custom_call.1} parent=1 // pred_region
      %350 = dma.done [#allocation4], 1024
    $region29: #{tpu_custom_call.1} parent=1 // pred_fallthru
      _
    %351 = vsyncpa [#allocation3], 1
    %352 = vsyncpa [#allocation6], 1
    %353 = vsyncpa [#allocation4], 1

</llo_original>
